<compile_context>
chip_gen: v7x
topology: tpu7x:2x2x1
jax: 0.10.0
libtpu: 0.0.40
codegen_flags: <defaults>
</compile_context>

<pallas_src>
import jax
import jax.numpy as jnp
from jax.experimental import pallas as pl
from jax.experimental.pallas import tpu as pltpu

EPS = 1e-8


def _l2norm_kernel(x_ref, o_ref):
    # x_ref: (TM, D) tile in VMEM.  All math in f32 (v5e VPU/EUP have no bf16).
    x = x_ref[...].astype(jnp.float32)

    row_max = jnp.max(x, axis=-1, keepdims=True)            # (TM, 1)
    sum_sq = jnp.sum(x * x, axis=-1, keepdims=True)         # (TM, 1)

    # Fused scale:  x/row_max / (||x/row_max|| + eps)  ==  x * scale
    inv_max = 1.0 / row_max                                  # exact, per-row
    norm = jnp.sqrt(sum_sq) * jnp.abs(inv_max) + EPS         # (TM, 1)
    scale = inv_max / norm                                   # (TM, 1)

    o_ref[...] = (x * scale).astype(o_ref.dtype)


def _round_down(v, m):
    return max(m, (v // m) * m)


def _pick_row_tile(n_rows, d, dtype):
    """Largest row tile whose double-buffered in+out blocks fit VMEM comfortably."""
    itemsize = jnp.dtype(dtype).itemsize
    # sublane multiple: 8 for 32-bit, 16 for 16-bit, 32 for 8-bit packing
    sublane = {4: 8, 2: 16, 1: 32}.get(itemsize, 8)
    # in + out, each double-buffered => ~4 resident copies of the block.
    # Keep under ~16 MiB total so there is headroom on v7x (32 MiB scoped
    # default of 64 MiB physical) for the f32 compute intermediates.
    budget_bytes = 16 * 1024 * 1024
    tm = budget_bytes // (4 * d * itemsize)
    tm = min(tm, 1024)  # diminishing returns past ~512-1024 rows
    if tm >= n_rows:
        return n_rows   # whole-array block; full dims always satisfy (8,128)
    tm = _round_down(tm, sublane)
    # Prefer a tile that divides the row count (avoids a padded tail block).
    t = tm
    while t >= sublane:
        if n_rows % t == 0:
            return t
        t -= sublane
    return tm           # fall back: Pallas masks the partial tail block


def l2_normalization(x, *, tm=None):
    """Pallas L2Normalization forward. x: (N, D)."""
    N, D = x.shape
    if tm is None:
        tm = _pick_row_tile(N, D, x.dtype)
    grid = (pl.cdiv(N, tm),)
    return pl.pallas_call(
        _l2norm_kernel,
        out_shape=jax.ShapeDtypeStruct((N, D), x.dtype),
        grid_spec=pltpu.PrefetchScalarGridSpec(
            num_scalar_prefetch=0,
            grid=grid,
            in_specs=[pl.BlockSpec((tm, D), lambda i: (i, 0))],
            out_specs=pl.BlockSpec((tm, D), lambda i: (i, 0)),
        ),
        compiler_params=pltpu.CompilerParams(
            dimension_semantics=("parallel",),   # shard row tiles across v7x TCs
        ),
    )(x)


def _reference(x):
    """Pure-JAX reference mirroring the PyTorch module exactly."""
    x = x.astype(jnp.float32)
    row_max = jnp.max(x, axis=1, keepdims=True)
    xs = x / row_max
    norm = jnp.sqrt(jnp.sum(xs * xs, axis=1, keepdims=True)) + EPS
    return xs / norm


if __name__ == "__main__":
    key = jax.random.PRNGKey(0)

    # Primary check: small, lane-friendly shape (auto tile => single block).
    N, D = 16, 128
    x = jax.random.normal(key, (N, D), dtype=jnp.float32) + 2.0  # keep row-max positive
    y = jax.block_until_ready(l2_normalization(x))
    y_ref = _reference(x)
    assert y.shape == (N, D)
    assert jnp.allclose(y, y_ref, atol=1e-5, rtol=1e-5), "mismatch vs reference"

    # Secondary check: force a multi-step row grid to exercise the tiled path.
    N2, D2 = 32, 128
    x2 = jax.random.normal(jax.random.PRNGKey(1), (N2, D2), dtype=jnp.float32) + 2.0
    y2 = jax.block_until_ready(l2_normalization(x2, tm=8))
    assert jnp.allclose(y2, _reference(x2), atol=1e-5, rtol=1e-5), "tiled mismatch"

    print("KERNEL_OK")
</pallas_src>

<mosaic_0001>
module attributes {stable_mosaic.version = 11 : i64} {
  func.func @_l2norm_kernel(%arg0: i32, %arg1: memref<16x128xf32, #tpu.memory_space<vmem>>, %arg2: memref<16x128xf32, #tpu.memory_space<vmem>>) attributes {dimension_semantics = [#tpu.dimension_semantics<parallel>], iteration_bounds = array<i64: 1>, scalar_prefetch = 0 : i64, scratch_operands = 0 : i64, tpu.core_type = #tpu.core_type<tc>, window_params = [{transform_indices = @transform_0, window_bounds = array<i64: 16, 128>}, {transform_indices = @transform_1, window_bounds = array<i64: 16, 128>}]} {
    %c0 = arith.constant 0 : index
    %c0_0 = arith.constant 0 : index
    %0 = vector.load %arg1[%c0, %c0_0] : memref<16x128xf32, #tpu.memory_space<vmem>>, vector<16x128xf32>
    %cst = arith.constant dense<0xFF800000> : vector<16xf32>
    %1 = vector.multi_reduction <maximumf>, %0, %cst [1] : vector<16x128xf32> to vector<16xf32>
    %2 = vector.shape_cast %1 : vector<16xf32> to vector<16x1xf32>
    %3 = arith.mulf %0, %0 : vector<16x128xf32>
    %cst_1 = arith.constant dense<0.000000e+00> : vector<16xf32>
    %4 = vector.multi_reduction <add>, %3, %cst_1 [1] : vector<16x128xf32> to vector<16xf32>
    %5 = vector.shape_cast %4 : vector<16xf32> to vector<16x1xf32>
    %cst_2 = arith.constant 1.000000e+00 : f32
    %6 = vector.broadcast %cst_2 : f32 to vector<16x1xf32>
    %7 = arith.divf %6, %2 : vector<16x1xf32>
    %8 = math.sqrt %5 : vector<16x1xf32>
    %9 = math.absf %7 : vector<16x1xf32>
    %10 = arith.mulf %8, %9 : vector<16x1xf32>
    %cst_3 = arith.constant 9.99999993E-9 : f32
    %11 = vector.broadcast %cst_3 : f32 to vector<16x1xf32>
    %12 = arith.addf %10, %11 : vector<16x1xf32>
    %13 = arith.divf %7, %12 : vector<16x1xf32>
    %14 = vector.broadcast %13 : vector<16x1xf32> to vector<16x128xf32>
    %15 = arith.mulf %0, %14 : vector<16x128xf32>
    %c0_4 = arith.constant 0 : index
    %c0_5 = arith.constant 0 : index
    %16 = vector.load %arg2[%c0_4, %c0_5] : memref<16x128xf32, #tpu.memory_space<vmem>>, vector<16x128xf32>
    tpu.vector_store %arg2[%c0_4, %c0_5], %15 {strides = array<i32>} : memref<16x128xf32, #tpu.memory_space<vmem>>, vector<16x128xf32>,
    return
  }
  func.func @transform_0(%arg0: i32) -> (i32, i32) {
    %c0_i32 = arith.constant 0 : i32
    %c0_i32_0 = arith.constant 0 : i32
    return %arg0, %c0_i32 : i32, i32
  }
  func.func @transform_1(%arg0: i32) -> (i32, i32) {
    %c0_i32 = arith.constant 0 : i32
    %c0_i32_0 = arith.constant 0 : i32
    return %arg0, %c0_i32 : i32, i32
  }
}

</mosaic_0001>

<llo_original>
// kernel: tpu_custom_call.1
$region0: #{tpu_custom_call.1}
  #allocation0 [shape = 'u32[]', space=smem, size = 0x4, offset = 0x4, fixed_abs, tag = 'smem constant byte address 0x4 - core index']
  #allocation1 [shape = 'u32[144,128]{1,0:T(1,128)}', space=vmem, size = 0x12000, scoped, tag = 'internal scratch']
  %s0 = inlined_call_operand.hbm [shape: f32[16,128], index: 0, kind: input, shape index: {}]
  %s1 = inlined_call_operand.hbm [shape: f32[16,128], index: 1, kind: output, shape index: {}]
  %s2 = sld [smem:[#allocation0]]
  $region18: #{tpu_custom_call.1} parent=0
    _
  %s4 = ssub.s32 1, %s2
  %s5 = scalar_select 0, %s4, %s2
  $region1: #{tpu_custom_call.1} parent=0
    #allocation2 [shape = 'u8[8192]{0}', space=vmem, size = 0x2000, scoped, tag = 'input window, operand 0, single buffered']
    #allocation3 [shape = 's32[1]{0}', space=sflag, size = 0x4, scoped, tag = 'scoped memory for tpu_custom_call.1']
    #allocation4 [shape = 's32[1]{0}', space=sflag, size = 0x4, scoped, tag = 'scoped memory for tpu_custom_call.1']
    #allocation5 [shape = 'u8[8192]{0}', space=vmem, size = 0x2000, scoped, tag = 'output window, operand 0, single buffered']
    %6 = vsyncpa [#allocation3], 0
    %7 = vsyncpa [#allocation4], 0
    // Predicated region
    $region2: #{tpu_custom_call.1} parent=1 // pred_check
      _
    $region3: #{tpu_custom_call.1} parent=1 // pred_check_branch
      %9 = sbr.rel (0) target = $region5
    $region4: #{tpu_custom_call.1} parent=1 // pred_region
      %s11 = ssub.s32 256, 256
      %12 = vsyncadd [#allocation3], %s11
      %s13 = sshll.u32 [#allocation2], 4
      %s14 = int_to_ptr.vmem [resolvable:$true] %s13
      %19 = dma.hbm_to_vmem [thread:$0]  %s0, 256, %s14, [#allocation3], 128, 128, 8
    $region5: #{tpu_custom_call.1} parent=1 // pred_fallthru
      _
    // Predicated region
    $region6: #{tpu_custom_call.1} parent=1 // pred_check
      _
    $region7: #{tpu_custom_call.1} parent=1 // pred_check_branch
      %21 = sbr.rel (0) target = $region9
    $region8: #{tpu_custom_call.1} parent=1 // pred_region
      %22 = dma.done [#allocation3], 256
    $region9: #{tpu_custom_call.1} parent=1 // pred_fallthru
      _
    %v23 = vld [vmem:[#allocation2] sm:$0xff]
    %v24 = vld [vmem:[#allocation2 + $0x8] sm:$0xff]
    %25 = vmax.xlane.f32.xlu0 %v23
    %v26 = vpop.xlane.xlu0 %25
    %27 = vmax.xlane.f32.xlu0 %v24
    %v28 = vpop.xlane.xlu0 %27
    %v29 = vmul.f32 %v23, %v23
    %v30 = vmul.f32 %v24, %v24
    %31 = vadd.xlane.f32.xlu0 %v29
    %v32 = vpop.xlane.xlu0 %31
    %33 = vadd.xlane.f32.xlu0 %v30
    %v34 = vpop.xlane.xlu0 %33
    %v35 = vrcp.pop %v26
    %v36 = vmul.f32 1.0, %v35
    %v37 = vrcp.pop %v28
    %v38 = vmul.f32 1.0, %v37
    %v39 = vrsqrt.pop %v32
    %v40 = vmul.f32 %v32, %v39
    %vm41 = vcmp.eq.f32.partialorder %v32, inf
    %v42 = vsel %vm41, %v32, %v40
    %vm43 = vcmp.eq.f32.partialorder %v32, 0.0
    %v44 = vand.u32 %v32, 2147483648
    %v45 = vsel %vm43, %v44, %v42
    %v46 = vrsqrt.pop %v34
    %v47 = vmul.f32 %v34, %v46
    %vm48 = vcmp.eq.f32.partialorder %v34, inf
    %v49 = vsel %vm48, %v34, %v47
    %vm50 = vcmp.eq.f32.partialorder %v34, 0.0
    %v51 = vand.u32 %v34, 2147483648
    %v52 = vsel %vm50, %v51, %v49
    %v53 = vand.u32 2147483647, %v36
    %v54 = vand.u32 2147483647, %v38
    %v55 = vmul.f32 %v45, %v53
    %v56 = vmul.f32 %v52, %v54
    %v57 = vadd.f32 %v55, 1e-08
    %v58 = vadd.f32 %v56, 1e-08
    %v59 = vrcp.pop %v57
    %v60 = vmul.f32 %v36, %v59
    %v61 = vrcp.pop %v58
    %v62 = vmul.f32 %v38, %v61
    %v63 = vmul.f32 %v23, %v60
    %v64 = vmul.f32 %v24, %v62
    %65 = vst [vmem:[#allocation5] sm:$0xff] %v63
    %66 = vst [vmem:[#allocation5 + $0x8] sm:$0xff] %v64
    // Predicated region
    $region10: #{tpu_custom_call.1} parent=1 // pred_check
      _
    $region11: #{tpu_custom_call.1} parent=1 // pred_check_branch
      %68 = sbr.rel (0) target = $region13
    $region12: #{tpu_custom_call.1} parent=1 // pred_region
      %s70 = ssub.s32 256, 256
      %71 = vsyncadd [#allocation4], %s70
      %s72 = sshll.u32 [#allocation5], 4
      %s73 = int_to_ptr.vmem [resolvable:$true] %s72
      %78 = dma.vmem_to_hbm [thread:$0]  %s73, 256, %s1, [#allocation4], 128, 128, 8
    $region13: #{tpu_custom_call.1} parent=1 // pred_fallthru
      _
    // Predicated region
    $region14: #{tpu_custom_call.1} parent=1 // pred_check
      _
    $region15: #{tpu_custom_call.1} parent=1 // pred_check_branch
      %80 = sbr.rel (0) target = $region17
    $region16: #{tpu_custom_call.1} parent=1 // pred_region
      %81 = dma.done [#allocation4], 256
    $region17: #{tpu_custom_call.1} parent=1 // pred_fallthru
      _
    %82 = vsyncpa [#allocation3], 1
    %83 = vsyncpa [#allocation4], 1

</llo_original>
